<compile_context>
chip_gen: v6e
topology: v6e:2x2x1
jax: 0.10.0
libtpu: 0.0.40
codegen_flags: <defaults>
</compile_context>

<pallas_src>
import functools

import jax
import jax.numpy as jnp
from jax.experimental import pallas as pl
from jax.experimental.pallas import tpu as pltpu


def _round_up(x, m):
    return (x + m - 1) // m * m


# ---------------------------------------------------------------------------
# One-time parameter preparation (NOT in the per-forward hot path)
# ---------------------------------------------------------------------------
def prepare_player_embedding_params(params, n_scalar=5):
    """Build the augmented block-diagonal table once.

    Table layout (V_pad, D_pad), zero elsewhere:
      rows [r_k, r_k+V_k)        -> embedding table k at columns [c_k, c_k+d_k)
      rows [r_s, r_s+n_scalar)   -> identity block at columns [c_s, c_s+n_scalar)
    A single (B, V_pad) selection matrix times this table yields the whole
    concatenated feature row, already padded to a lane-dense width D_pad.
    """
    order = ("weapon", "rank", "sub_weapon", "special_weapon")
    tables = [jnp.asarray(params[name], jnp.float32) for name in order]
    vocab_sizes = [int(t.shape[0]) for t in tables]
    dims = [int(t.shape[1]) for t in tables]

    n_dim = sum(dims) + n_scalar
    v_total = sum(vocab_sizes) + n_scalar
    v_pad = _round_up(max(v_total, 128), 128)
    d_pad = _round_up(max(n_dim, 128), 128)

    row_offsets, col_offsets = [], []
    r = c = 0
    for v, d in zip(vocab_sizes, dims):
        row_offsets.append(r)
        col_offsets.append(c)
        r += v
        c += d
    scalar_row, scalar_col = r, c

    tbl = jnp.zeros((v_pad, d_pad), jnp.float32)
    for t, ro, co in zip(tables, row_offsets, col_offsets):
        tbl = tbl.at[ro:ro + t.shape[0], co:co + t.shape[1]].set(t)
    tbl = tbl.at[scalar_row:scalar_row + n_scalar,
                 scalar_col:scalar_col + n_scalar].set(
                     jnp.eye(n_scalar, dtype=jnp.float32))

    meta = dict(
        row_offsets=tuple(row_offsets),
        scalar_row=int(scalar_row),
        n_scalar=int(n_scalar),
        n_dim=int(n_dim),
        v_pad=int(v_pad),
        d_pad=int(d_pad),
    )
    return tbl, meta


# ---------------------------------------------------------------------------
# Fused kernel: build selection matrix -> one MXU matmul -> one dense store
# ---------------------------------------------------------------------------
def _player_embedding_kernel(idx_ref, scal_ref, tbl_ref, out_ref,
                             *, row_offsets, scalar_row, n_scalar):
    B = out_ref.shape[0]
    v_pad = tbl_ref.shape[0]

    idx = idx_ref[...]      # (B, 4) int32
    scal = scal_ref[...]    # (B, n_scalar) float32

    lane = jax.lax.broadcasted_iota(jnp.int32, (B, v_pad), 1)

    # Selection matrix M: one-hot columns for the 4 (offset-shifted) indices,
    # plus the raw scalar values in columns [scalar_row, scalar_row+n_scalar).
    m = (idx[:, 0:1] + row_offsets[0] == lane).astype(jnp.float32)
    for k in range(1, len(row_offsets)):
        m = m + (idx[:, k:k + 1] + row_offsets[k] == lane).astype(jnp.float32)
    for j in range(n_scalar):
        m = m + jnp.where(lane == scalar_row + j, scal[:, j:j + 1], 0.0)

    # One matmul produces the entire concatenated (lane-padded) feature row.
    out_ref[...] = jnp.dot(m, tbl_ref[...], preferred_element_type=jnp.float32)


# ---------------------------------------------------------------------------
# Per-forward wrapper (single pallas_call, 3 input DMAs, no grid)
# ---------------------------------------------------------------------------
def player_embedding(weapon, rank, level, sub_weapon, special_weapon,
                     weapon_range, weapon_power, weapon_rounds_per,
                     weapon_iine, table_aug, meta):
    B = weapon.shape[0]

    # Merge the 9 module inputs into 2 small arrays.
    idx = jnp.stack(
        [weapon, rank, sub_weapon, special_weapon], axis=1).astype(jnp.int32)
    scalars = jnp.stack(
        [level, weapon_range, weapon_power, weapon_rounds_per, weapon_iine],
        axis=1).astype(jnp.float32)

    kernel = functools.partial(
        _player_embedding_kernel,
        row_offsets=meta["row_offsets"],
        scalar_row=meta["scalar_row"],
        n_scalar=meta["n_scalar"],
    )

    vmem = pl.BlockSpec(memory_space=pltpu.MemorySpace.VMEM)
    out_padded = pl.pallas_call(
        kernel,
        out_shape=jax.ShapeDtypeStruct((B, meta["d_pad"]), jnp.float32),
        in_specs=[vmem, vmem, vmem],
        out_specs=vmem,
    )(idx, scalars, table_aug)

    # Module semantics: return (B, n_dim).  A fused downstream consumer could
    # read the lane-padded slab directly and skip this slice.
    return out_padded[:, :meta["n_dim"]]


# ---------------------------------------------------------------------------
# Driver
# ---------------------------------------------------------------------------
if __name__ == "__main__":
    batch = 8
    n_weapon, d_weapon = 64, 32
    n_rank, d_rank = 12, 16
    n_sub, d_sub = 16, 8
    n_special, d_special = 16, 8
    n_dim = d_weapon + d_rank + d_sub + d_special + 5

    key = jax.random.PRNGKey(0)
    keys = jax.random.split(key, 13)

    params = dict(
        weapon=jax.random.normal(keys[0], (n_weapon, d_weapon), jnp.float32),
        rank=jax.random.normal(keys[1], (n_rank, d_rank), jnp.float32),
        sub_weapon=jax.random.normal(keys[2], (n_sub, d_sub), jnp.float32),
        special_weapon=jax.random.normal(keys[3], (n_special, d_special), jnp.float32),
    )

    # Built once, outside the per-forward path.
    table_aug, meta = prepare_player_embedding_params(params)
    table_aug = jax.block_until_ready(table_aug)

    weapon = jax.random.randint(keys[4], (batch,), 0, n_weapon, jnp.int32)
    rank = jax.random.randint(keys[5], (batch,), 0, n_rank, jnp.int32)
    sub_weapon = jax.random.randint(keys[6], (batch,), 0, n_sub, jnp.int32)
    special_weapon = jax.random.randint(keys[7], (batch,), 0, n_special, jnp.int32)
    level = jax.random.uniform(keys[8], (batch,), jnp.float32)
    weapon_range = jax.random.uniform(keys[9], (batch,), jnp.float32)
    weapon_power = jax.random.uniform(keys[10], (batch,), jnp.float32)
    weapon_rounds_per = jax.random.uniform(keys[11], (batch,), jnp.float32)
    weapon_iine = jax.random.uniform(keys[12], (batch,), jnp.float32)

    feat = player_embedding(
        weapon, rank, level, sub_weapon, special_weapon,
        weapon_range, weapon_power, weapon_rounds_per, weapon_iine,
        table_aug, meta,
    )
    feat = jax.block_until_ready(feat)

    # Pure-JAX reference (embedding lookup + concat), matching torch semantics.
    ref = jnp.concatenate(
        [
            params["weapon"][weapon],
            params["rank"][rank],
            params["sub_weapon"][sub_weapon],
            params["special_weapon"][special_weapon],
            level[:, None], weapon_range[:, None], weapon_power[:, None],
            weapon_rounds_per[:, None], weapon_iine[:, None],
        ],
        axis=1,
    )

    assert feat.shape == (batch, n_dim), feat.shape
    assert jnp.allclose(feat, ref, atol=1e-5, rtol=1e-5)
    print("KERNEL_OK")
</pallas_src>

<mosaic_0001>
module attributes {stable_mosaic.version = 11 : i64} {
  func.func @_player_embedding_kernel(%arg0: memref<8x4xi32, #tpu.memory_space<vmem>>, %arg1: memref<8x5xf32, #tpu.memory_space<vmem>>, %arg2: memref<128x128xf32, #tpu.memory_space<vmem>>, %arg3: memref<8x128xf32, #tpu.memory_space<vmem>>) attributes {dimension_semantics = [], scalar_prefetch = 0 : i64, scratch_operands = 0 : i64, tpu.core_type = #tpu.core_type<tc>} {
    %c0 = arith.constant 0 : index
    %c0_0 = arith.constant 0 : index
    %0 = vector.load %arg0[%c0, %c0_0] : memref<8x4xi32, #tpu.memory_space<vmem>>, vector<8x4xi32>
    %c0_1 = arith.constant 0 : index
    %c0_2 = arith.constant 0 : index
    %1 = vector.load %arg1[%c0_1, %c0_2] : memref<8x5xf32, #tpu.memory_space<vmem>>, vector<8x5xf32>
    %2 = tpu.iota {dimensions = array<i32: 1>} : vector<8x128xi32>
    %3 = vector.extract_strided_slice %0 {offsets = [0, 0], sizes = [8, 1], strides = [1, 1]} : vector<8x4xi32> to vector<8x1xi32>
    %c0_i32 = arith.constant 0 : i32
    %4 = vector.broadcast %c0_i32 : i32 to vector<8x1xi32>
    %5 = arith.addi %3, %4 : vector<8x1xi32>
    %6 = vector.broadcast %5 : vector<8x1xi32> to vector<8x128xi32>
    %7 = arith.cmpi eq, %6, %2 : vector<8x128xi32>
    %8 = arith.extui %7 : vector<8x128xi1> to vector<8x128xi32>
    %9 = arith.sitofp %8 : vector<8x128xi32> to vector<8x128xf32>
    %10 = vector.extract_strided_slice %0 {offsets = [0, 1], sizes = [8, 1], strides = [1, 1]} : vector<8x4xi32> to vector<8x1xi32>
    %c64_i32 = arith.constant 64 : i32
    %11 = vector.broadcast %c64_i32 : i32 to vector<8x1xi32>
    %12 = arith.addi %10, %11 : vector<8x1xi32>
    %13 = vector.broadcast %12 : vector<8x1xi32> to vector<8x128xi32>
    %14 = arith.cmpi eq, %13, %2 : vector<8x128xi32>
    %15 = arith.extui %14 : vector<8x128xi1> to vector<8x128xi32>
    %16 = arith.sitofp %15 : vector<8x128xi32> to vector<8x128xf32>
    %17 = arith.addf %9, %16 : vector<8x128xf32>
    %18 = vector.extract_strided_slice %0 {offsets = [0, 2], sizes = [8, 1], strides = [1, 1]} : vector<8x4xi32> to vector<8x1xi32>
    %c76_i32 = arith.constant 76 : i32
    %19 = vector.broadcast %c76_i32 : i32 to vector<8x1xi32>
    %20 = arith.addi %18, %19 : vector<8x1xi32>
    %21 = vector.broadcast %20 : vector<8x1xi32> to vector<8x128xi32>
    %22 = arith.cmpi eq, %21, %2 : vector<8x128xi32>
    %23 = arith.extui %22 : vector<8x128xi1> to vector<8x128xi32>
    %24 = arith.sitofp %23 : vector<8x128xi32> to vector<8x128xf32>
    %25 = arith.addf %17, %24 : vector<8x128xf32>
    %26 = vector.extract_strided_slice %0 {offsets = [0, 3], sizes = [8, 1], strides = [1, 1]} : vector<8x4xi32> to vector<8x1xi32>
    %c92_i32 = arith.constant 92 : i32
    %27 = vector.broadcast %c92_i32 : i32 to vector<8x1xi32>
    %28 = arith.addi %26, %27 : vector<8x1xi32>
    %29 = vector.broadcast %28 : vector<8x1xi32> to vector<8x128xi32>
    %30 = arith.cmpi eq, %29, %2 : vector<8x128xi32>
    %31 = arith.extui %30 : vector<8x128xi1> to vector<8x128xi32>
    %32 = arith.sitofp %31 : vector<8x128xi32> to vector<8x128xf32>
    %33 = arith.addf %25, %32 : vector<8x128xf32>
    %c108_i32 = arith.constant 108 : i32
    %34 = vector.broadcast %c108_i32 : i32 to vector<8x128xi32>
    %35 = arith.cmpi eq, %2, %34 : vector<8x128xi32>
    %36 = vector.extract_strided_slice %1 {offsets = [0, 0], sizes = [8, 1], strides = [1, 1]} : vector<8x5xf32> to vector<8x1xf32>
    %cst = arith.constant 0.000000e+00 : f32
    %37 = vector.shape_cast %36 : vector<8x1xf32> to vector<8x1xf32>
    %38 = vector.broadcast %37 : vector<8x1xf32> to vector<8x128xf32>
    %39 = vector.broadcast %cst : f32 to vector<8x128xf32>
    %40 = arith.select %35, %38, %39 : vector<8x128xi1>, vector<8x128xf32>
    %41 = arith.addf %33, %40 : vector<8x128xf32>
    %c109_i32 = arith.constant 109 : i32
    %42 = vector.broadcast %c109_i32 : i32 to vector<8x128xi32>
    %43 = arith.cmpi eq, %2, %42 : vector<8x128xi32>
    %44 = vector.extract_strided_slice %1 {offsets = [0, 1], sizes = [8, 1], strides = [1, 1]} : vector<8x5xf32> to vector<8x1xf32>
    %cst_3 = arith.constant 0.000000e+00 : f32
    %45 = vector.shape_cast %44 : vector<8x1xf32> to vector<8x1xf32>
    %46 = vector.broadcast %45 : vector<8x1xf32> to vector<8x128xf32>
    %47 = vector.broadcast %cst_3 : f32 to vector<8x128xf32>
    %48 = arith.select %43, %46, %47 : vector<8x128xi1>, vector<8x128xf32>
    %49 = arith.addf %41, %48 : vector<8x128xf32>
    %c110_i32 = arith.constant 110 : i32
    %50 = vector.broadcast %c110_i32 : i32 to vector<8x128xi32>
    %51 = arith.cmpi eq, %2, %50 : vector<8x128xi32>
    %52 = vector.extract_strided_slice %1 {offsets = [0, 2], sizes = [8, 1], strides = [1, 1]} : vector<8x5xf32> to vector<8x1xf32>
    %cst_4 = arith.constant 0.000000e+00 : f32
    %53 = vector.shape_cast %52 : vector<8x1xf32> to vector<8x1xf32>
    %54 = vector.broadcast %53 : vector<8x1xf32> to vector<8x128xf32>
    %55 = vector.broadcast %cst_4 : f32 to vector<8x128xf32>
    %56 = arith.select %51, %54, %55 : vector<8x128xi1>, vector<8x128xf32>
    %57 = arith.addf %49, %56 : vector<8x128xf32>
    %c111_i32 = arith.constant 111 : i32
    %58 = vector.broadcast %c111_i32 : i32 to vector<8x128xi32>
    %59 = arith.cmpi eq, %2, %58 : vector<8x128xi32>
    %60 = vector.extract_strided_slice %1 {offsets = [0, 3], sizes = [8, 1], strides = [1, 1]} : vector<8x5xf32> to vector<8x1xf32>
    %cst_5 = arith.constant 0.000000e+00 : f32
    %61 = vector.shape_cast %60 : vector<8x1xf32> to vector<8x1xf32>
    %62 = vector.broadcast %61 : vector<8x1xf32> to vector<8x128xf32>
    %63 = vector.broadcast %cst_5 : f32 to vector<8x128xf32>
    %64 = arith.select %59, %62, %63 : vector<8x128xi1>, vector<8x128xf32>
    %65 = arith.addf %57, %64 : vector<8x128xf32>
    %c112_i32 = arith.constant 112 : i32
    %66 = vector.broadcast %c112_i32 : i32 to vector<8x128xi32>
    %67 = arith.cmpi eq, %2, %66 : vector<8x128xi32>
    %68 = vector.extract_strided_slice %1 {offsets = [0, 4], sizes = [8, 1], strides = [1, 1]} : vector<8x5xf32> to vector<8x1xf32>
    %cst_6 = arith.constant 0.000000e+00 : f32
    %69 = vector.shape_cast %68 : vector<8x1xf32> to vector<8x1xf32>
    %70 = vector.broadcast %69 : vector<8x1xf32> to vector<8x128xf32>
    %71 = vector.broadcast %cst_6 : f32 to vector<8x128xf32>
    %72 = arith.select %67, %70, %71 : vector<8x128xi1>, vector<8x128xf32>
    %73 = arith.addf %65, %72 : vector<8x128xf32>
    %c0_7 = arith.constant 0 : index
    %c0_8 = arith.constant 0 : index
    %74 = vector.load %arg2[%c0_7, %c0_8] : memref<128x128xf32, #tpu.memory_space<vmem>>, vector<128x128xf32>
    %cst_9 = arith.constant dense<0.000000e+00> : vector<8x128xf32>
    %75 = tpu.matmul %73, %74, %cst_9 {dimension_numbers = #tpu.dot_dimension_numbers<[1], [0], [0], [1], [0, 0, 1, 1], [], []>} : vector<8x128xf32>, vector<128x128xf32>, vector<8x128xf32> -> vector<8x128xf32>
    %c0_10 = arith.constant 0 : index
    %c0_11 = arith.constant 0 : index
    %76 = vector.load %arg3[%c0_10, %c0_11] : memref<8x128xf32, #tpu.memory_space<vmem>>, vector<8x128xf32>
    tpu.vector_store %arg3[%c0_10, %c0_11], %75 {strides = array<i32>} : memref<8x128xf32, #tpu.memory_space<vmem>>, vector<8x128xf32>,
    return
  }
}

</mosaic_0001>

<llo_original>
// kernel: tpu_custom_call.1
$region0: #{tpu_custom_call.1}
  #allocation0 [shape = 'u32[]', space=smem, size = 0x4, offset = 0x4, fixed_abs, tag = 'smem constant byte address 0x4 - core index']
  #allocation1 [shape = 'u32[144,128]{1,0:T(1,128)}', space=vmem, size = 0x12000, scoped, tag = 'internal scratch']
  %s0 = inlined_call_operand.vmem [shape: s32[8,4], index: 0, kind: input, shape index: {}]
  %s1 = inlined_call_operand.vmem [shape: f32[8,5], index: 1, kind: input, shape index: {}]
  %s2 = inlined_call_operand.hbm [shape: f32[128,128], index: 2, kind: input, shape index: {}]
  %s3 = inlined_call_operand.hbm [shape: f32[8,128], index: 3, kind: output, shape index: {}]
  %s4 = sld [smem:[#allocation0]]
  $region26: #{tpu_custom_call.1} parent=0
    _
  %s6 = ssub.s32 1, %s4
  %s7 = scalar_select 0, %s6, %s4
  $region1: #{tpu_custom_call.1} parent=0
    #allocation2 [shape = 'u8[65536]{0}', space=vmem, size = 0x10000, scoped, tag = 'input window, operand 2, single buffered']
    #allocation3 [shape = 's32[1]{0}', space=sflag, size = 0x4, scoped, tag = 'scoped memory for tpu_custom_call.1']
    #allocation4 [shape = 's32[1]{0}', space=sflag, size = 0x4, scoped, tag = 'scoped memory for tpu_custom_call.1']
    #allocation5 [shape = 'u8[4096]{0}', space=vmem, size = 0x1000, scoped, tag = 'output window, operand 0, single buffered']
    %8 = vsyncpa [#allocation3], 0
    %9 = vsyncpa [#allocation4], 0
    // Predicated region
    $region2: #{tpu_custom_call.1} parent=1 // pred_check
      _
    $region3: #{tpu_custom_call.1} parent=1 // pred_check_branch
      %11 = sbr.rel (0) target = $region5
    $region4: #{tpu_custom_call.1} parent=1 // pred_region
      _
    $region5: #{tpu_custom_call.1} parent=1 // pred_fallthru
      _
    // Predicated region
    $region6: #{tpu_custom_call.1} parent=1 // pred_check
      _
    $region7: #{tpu_custom_call.1} parent=1 // pred_check_branch
      %13 = sbr.rel (0) target = $region9
    $region8: #{tpu_custom_call.1} parent=1 // pred_region
      _
    $region9: #{tpu_custom_call.1} parent=1 // pred_fallthru
      _
    // Predicated region
    $region10: #{tpu_custom_call.1} parent=1 // pred_check
      _
    $region11: #{tpu_custom_call.1} parent=1 // pred_check_branch
      %15 = sbr.rel (0) target = $region13
    $region12: #{tpu_custom_call.1} parent=1 // pred_region
      %s17 = ssub.s32 2048, 2048
      %18 = vsyncadd [#allocation3], %s17
      %s19 = sshll.u32 [#allocation2], 4
      %s20 = int_to_ptr.vmem [resolvable:$true] %s19
      %25 = dma.hbm_to_vmem [thread:$0]  %s2, 2048, %s20, [#allocation3], 128, 128, 8
    $region13: #{tpu_custom_call.1} parent=1 // pred_fallthru
      _
    // Predicated region
    $region14: #{tpu_custom_call.1} parent=1 // pred_check
      _
    $region15: #{tpu_custom_call.1} parent=1 // pred_check_branch
      %27 = sbr.rel (0) target = $region17
    $region16: #{tpu_custom_call.1} parent=1 // pred_region
      %28 = dma.done [#allocation3], 2048
    $region17: #{tpu_custom_call.1} parent=1 // pred_fallthru
      _
    %v29 = vld [vmem:[%s0] sm:$0xff]
    %v30 = vld [vmem:[%s1] sm:$0xff]
    %v31 = vlaneseq
    %v32 = vand.u32 %v31, 127
    %33 = vset.pattern.permute.xlu0 0
    %34 = vperm.xlu0 %33, %v29
    %v35 = vpop.permute.xlu0 %34
    %vm36 = vcmp.eq.s32.totalorder %v35, %v32
    %v37 = vsel %vm36, 1, 0
    %v38 = vcvt.s32.f32 %v37
    %v39 = vadd.s32 %v29, 64
    %40 = vset.pattern.permute.xlu0 1
    %41 = vperm.xlu0 %40, %v39
    %v42 = vpop.permute.xlu0 %41
    %vm43 = vcmp.eq.s32.totalorder %v42, %v32
    %v44 = vsel %vm43, 1, 0
    %v45 = vcvt.s32.f32 %v44
    %v46 = vadd.f32 %v38, %v45
    %v47 = vadd.s32 %v29, 76
    %48 = vset.pattern.permute.xlu0 2
    %49 = vperm.xlu0 %48, %v47
    %v50 = vpop.permute.xlu0 %49
    %vm51 = vcmp.eq.s32.totalorder %v50, %v32
    %v52 = vsel %vm51, 1, 0
    %v53 = vcvt.s32.f32 %v52
    %v54 = vadd.f32 %v46, %v53
    %v55 = vadd.s32 %v29, 92
    %56 = vset.pattern.permute.xlu0 3
    %57 = vperm.xlu0 %56, %v55
    %v58 = vpop.permute.xlu0 %57
    %vm59 = vcmp.eq.s32.totalorder %v58, %v32
    %v60 = vsel %vm59, 1, 0
    %v61 = vcvt.s32.f32 %v60
    %v62 = vadd.f32 %v54, %v61
    %vm63 = vcmp.eq.s32.totalorder %v32, 108
    %65 = vset.pattern.permute.xlu0 0
    %66 = vperm.xlu0 %65, %v30
    %v67 = vpop.permute.xlu0 %66
    %v69 = vsel %vm63, %v67, 0.0
    %v70 = vadd.f32 %v62, %v69
    %vm71 = vcmp.eq.s32.totalorder %v32, 109
    %72 = vset.pattern.permute.xlu0 1
    %73 = vperm.xlu0 %72, %v30
    %v74 = vpop.permute.xlu0 %73
    %v76 = vsel %vm71, %v74, 0.0
    %v77 = vadd.f32 %v70, %v76
    %vm78 = vcmp.eq.s32.totalorder %v32, 110
    %79 = vset.pattern.permute.xlu0 2
    %80 = vperm.xlu0 %79, %v30
    %v81 = vpop.permute.xlu0 %80
    %v83 = vsel %vm78, %v81, 0.0
    %v84 = vadd.f32 %v77, %v83
    %vm85 = vcmp.eq.s32.totalorder %v32, 111
    %86 = vset.pattern.permute.xlu0 3
    %87 = vperm.xlu0 %86, %v30
    %v88 = vpop.permute.xlu0 %87
    %v90 = vsel %vm85, %v88, 0.0
    %v91 = vadd.f32 %v84, %v90
    %vm92 = vcmp.eq.s32.totalorder %v32, 112
    %93 = vset.pattern.permute.xlu0 4
    %94 = vperm.xlu0 %93, %v30
    %v95 = vpop.permute.xlu0 %94
    %v97 = vsel %vm92, %v95, 0.0
    %v98 = vadd.f32 %v91, %v97
    %v99 = vld [vmem:[#allocation2] sm:$0xff]
    %v100 = vld [vmem:[#allocation2 + $0x8] sm:$0xff]
    %v101 = vld [vmem:[#allocation2 + $0x10] sm:$0xff]
    %v102 = vld [vmem:[#allocation2 + $0x18] sm:$0xff]
    %v103 = vld [vmem:[#allocation2 + $0x20] sm:$0xff]
    %v104 = vld [vmem:[#allocation2 + $0x28] sm:$0xff]
    %v105 = vld [vmem:[#allocation2 + $0x30] sm:$0xff]
    %v106 = vld [vmem:[#allocation2 + $0x38] sm:$0xff]
    %v107 = vld [vmem:[#allocation2 + $0x40] sm:$0xff]
    %v108 = vld [vmem:[#allocation2 + $0x48] sm:$0xff]
    %v109 = vld [vmem:[#allocation2 + $0x50] sm:$0xff]
    %v110 = vld [vmem:[#allocation2 + $0x58] sm:$0xff]
    %v111 = vld [vmem:[#allocation2 + $0x60] sm:$0xff]
    %v112 = vld [vmem:[#allocation2 + $0x68] sm:$0xff]
    %v113 = vld [vmem:[#allocation2 + $0x70] sm:$0xff]
    %v114 = vld [vmem:[#allocation2 + $0x78] sm:$0xff]
    %115 = vmatprep.subr.mxu0 0.0
    %116 = vmatpush1.msra.mxu0 %v114
    %117 = vmatprep.subr.mxu0 0.0
    %118 = vmatpush1.msra.mxu0 %v113
    %119 = vmatprep.subr.mxu0 0.0
    %120 = vmatpush1.msra.mxu0 %v112
    %121 = vmatprep.subr.mxu0 0.0
    %122 = vmatpush1.msra.mxu0 %v111
    %123 = vmatprep.subr.mxu0 0.0
    %124 = vmatpush1.msra.mxu0 %v110
    %125 = vmatprep.subr.mxu0 0.0
    %126 = vmatpush1.msra.mxu0 %v109
    %127 = vmatprep.subr.mxu0 0.0
    %128 = vmatpush1.msra.mxu0 %v108
    %129 = vmatprep.subr.mxu0 0.0
    %130 = vmatpush1.msra.mxu0 %v107
    %131 = vmatprep.subr.mxu0 0.0
    %132 = vmatpush1.msra.mxu0 %v106
    %133 = vmatprep.subr.mxu0 0.0
    %134 = vmatpush1.msra.mxu0 %v105
    %135 = vmatprep.subr.mxu0 0.0
    %136 = vmatpush1.msra.mxu0 %v104
    %137 = vmatprep.subr.mxu0 0.0
    %138 = vmatpush1.msra.mxu0 %v103
    %139 = vmatprep.subr.mxu0 0.0
    %140 = vmatpush1.msra.mxu0 %v102
    %141 = vmatprep.subr.mxu0 0.0
    %142 = vmatpush1.msra.mxu0 %v101
    %143 = vmatprep.subr.mxu0 0.0
    %144 = vmatpush1.msra.mxu0 %v100
    %145 = vmatprep.subr.mxu0 0.0
    %146 = vmatpush1.msra.mxu0 %v99
    %147 = vmatprep.subr.mxu0 0.0
    %148 = vmatpush2.msra.mxu0 0.0
    %149 = vmatprep.subr.mxu0 0.0
    %150 = vmatpush2.msra.mxu0 0.0
    %151 = vmatprep.subr.mxu0 0.0
    %152 = vmatpush2.msra.mxu0 0.0
    %153 = vmatprep.subr.mxu0 0.0
    %154 = vmatpush2.msra.mxu0 0.0
    %155 = vmatprep.subr.mxu0 0.0
    %156 = vmatpush2.msra.mxu0 0.0
    %157 = vmatprep.subr.mxu0 0.0
    %158 = vmatpush2.msra.mxu0 0.0
    %159 = vmatprep.subr.mxu0 0.0
    %160 = vmatpush2.msra.mxu0 0.0
    %161 = vmatprep.subr.mxu0 0.0
    %162 = vmatpush2.msra.mxu0 0.0
    %163 = vmatprep.subr.mxu0 0.0
    %164 = vmatpush2.msra.mxu0 0.0
    %165 = vmatprep.subr.mxu0 0.0
    %166 = vmatpush2.msra.mxu0 0.0
    %167 = vmatprep.subr.mxu0 0.0
    %168 = vmatpush2.msra.mxu0 0.0
    %169 = vmatprep.subr.mxu0 0.0
    %170 = vmatpush2.msra.mxu0 0.0
    %171 = vmatprep.subr.mxu0 0.0
    %172 = vmatpush2.msra.mxu0 0.0
    %173 = vmatprep.subr.mxu0 0.0
    %174 = vmatpush2.msra.mxu0 0.0
    %175 = vmatprep.subr.mxu0 0.0
    %176 = vmatpush2.msra.mxu0 0.0
    %177 = vmatprep.subr.mxu0 0.0
    %178 = vmatpush2.msra.mxu0 0.0
    %179 = vmatprep.mubr.f32.mxu0 0.0
    %180 = vmatmul.mubr.f32.gmra.mxu0 %v98
    %v181 = vpop.f32.mrf.mxu0
    %v182 = vadd.f32 0.0, %v181
    %v183 = vpop.f32.mrf.mxu0
    %184 = vdwg.mxu0
    %185 = vst [vmem:[#allocation5] sm:$0xff] %v182
    // Predicated region
    $region18: #{tpu_custom_call.1} parent=1 // pred_check
      _
    $region19: #{tpu_custom_call.1} parent=1 // pred_check_branch
      %187 = sbr.rel (0) target = $region21
    $region20: #{tpu_custom_call.1} parent=1 // pred_region
      %s189 = ssub.s32 128, 128
      %190 = vsyncadd [#allocation4], %s189
      %s192 = sshll.u32 [#allocation5], 4
      %s193 = int_to_ptr.vmem [resolvable:$true] %s192
      %195 = dma.vmem_to_hbm [thread:$0]  %s193, 128, %s3, [#allocation4]
    $region21: #{tpu_custom_call.1} parent=1 // pred_fallthru
      _
    // Predicated region
    $region22: #{tpu_custom_call.1} parent=1 // pred_check
      _
    $region23: #{tpu_custom_call.1} parent=1 // pred_check_branch
      %197 = sbr.rel (0) target = $region25
    $region24: #{tpu_custom_call.1} parent=1 // pred_region
      %198 = dma.done [#allocation4], 128
    $region25: #{tpu_custom_call.1} parent=1 // pred_fallthru
      _
    %199 = vsyncpa [#allocation3], 1
    %200 = vsyncpa [#allocation4], 1

</llo_original>
